<compile_context>
chip_gen: v7x
topology: tpu7x:2x2x1
jax: 0.10.0
libtpu: 0.0.40
codegen_flags: <defaults>
</compile_context>

<pallas_src>
import jax
import jax.numpy as jnp
from jax.experimental import pallas as pl
from jax.experimental.pallas import tpu as pltpu


def _round_up(x, m):
    return (x + m - 1) // m * m


# ---------------------------------------------------------------------------
# forward(): identity — no kernel, zero HBM traffic.
# ---------------------------------------------------------------------------
def farthest_point_selector_forward(x):
    """Exact semantics of FarthestPointSelector.forward: return x."""
    return x


# ---------------------------------------------------------------------------
# nbvs() hot path: acq_scores[i] = sum_j || cand_center_i - train_center_j ||_2
# ---------------------------------------------------------------------------
def _acq_scores_ref(cand, train):
    """Pure-JAX reference; also the small-input fast path."""
    d = cand[:, None, :] - train[None, :, :]
    return jnp.sum(jnp.sqrt(jnp.sum(d * d, axis=-1)), axis=-1)


def _acq_score_kernel(cand_ref, train_ref, o_ref):
    k = pl.program_id(1)                       # train-tile (reduction) axis

    @pl.when(k == 0)
    def _init():
        o_ref[...] = jnp.zeros_like(o_ref)

    # (TT, 8) @ (8, TC) on the MXU; homogeneous packing gives ||t - c||^2.
    d2 = jnp.dot(train_ref[...], cand_ref[...],
                 preferred_element_type=jnp.float32,
                 precision=jax.lax.Precision.HIGHEST)
    # Cancellation can produce tiny negatives -> clamp before sqrt (EUP).
    dist = jnp.sqrt(jnp.maximum(d2, 0.0))                  # (TT, TC)
    # Zero-padded train rows give d2 == 0 exactly -> contribute nothing.
    o_ref[...] += jnp.sum(dist, axis=0, keepdims=True)     # (1, TC) lane-dense


def _acq_scores_pallas(cand, train):
    Nc, _ = cand.shape
    Nt, _ = train.shape

    # Candidate tile on the 128-lane axis; guarantee >=2 parallel blocks
    # whenever Nc > 128 so both v7x TensorCores get work.
    nc128 = _round_up(Nc, 128)
    tc = 128 if nc128 <= 256 else 256
    nc_pad = _round_up(Nc, tc)

    # Train tile on the sublane axis; large to amortize per-grid-step overhead.
    tt = min(_round_up(Nt, 8), 4096)
    nt_pad = _round_up(Nt, tt)

    # Host-side homogeneous packing (XLA ops, not kernel work).
    c2 = jnp.sum(cand * cand, axis=1)                      # (Nc,)
    t2 = jnp.sum(train * train, axis=1)                    # (Nt,)
    cand_cols = jnp.concatenate(
        [-2.0 * cand.T,                                    # (3, Nc)
         jnp.ones((1, Nc), jnp.float32),
         c2[None, :],
         jnp.zeros((3, Nc), jnp.float32)], axis=0)         # (8, Nc)
    train_rows = jnp.concatenate(
        [train,                                            # (Nt, 3)
         t2[:, None],
         jnp.ones((Nt, 1), jnp.float32),
         jnp.zeros((Nt, 3), jnp.float32)], axis=1)         # (Nt, 8)
    cand_p = jnp.zeros((8, nc_pad), jnp.float32).at[:, :Nc].set(cand_cols)
    train_p = jnp.zeros((nt_pad, 8), jnp.float32).at[:Nt, :].set(train_rows)

    scores = pl.pallas_call(
        _acq_score_kernel,
        out_shape=jax.ShapeDtypeStruct((1, nc_pad), jnp.float32),
        grid=(nc_pad // tc, nt_pad // tt),
        in_specs=[
            pl.BlockSpec((8, tc), lambda i, k: (0, i)),    # candidate tile
            pl.BlockSpec((tt, 8), lambda i, k: (k, 0)),    # train tile (streamed)
        ],
        out_specs=pl.BlockSpec((1, tc), lambda i, k: (0, i)),
        compiler_params=pltpu.CompilerParams(
            dimension_semantics=("parallel", "arbitrary")),
    )(cand_p, train_p)

    return scores[0, :Nc]


def acquisition_scores(cand_centers, train_centers, *, force_pallas=False):
    """cand_centers: (Nc, 3), train_centers: (Nt, 3) -> (Nc,) f32 scores."""
    cand = jnp.asarray(cand_centers, jnp.float32)
    train = jnp.asarray(train_centers, jnp.float32)
    Nc, D = cand.shape
    Nt, _ = train.shape
    assert D == 3, "camera centers are 3-d"

    # Small-input fast path: one padded grid step would be launch-dominated.
    if not force_pallas and Nc * Nt < (1 << 17):
        return _acq_scores_ref(cand, train)
    return _acq_scores_pallas(cand, train)


def nbvs(cand_centers, train_centers, num_views, *, force_pallas=False):
    """Select the `num_views` candidates farthest (summed L2) from train views."""
    scores = acquisition_scores(cand_centers, train_centers,
                                force_pallas=force_pallas)
    # torch.sort(descending)[:num_views]  ==  top_k on the scores.
    _, idx = jax.lax.top_k(scores, num_views)
    # TODO(synk): mapping through scene.get_candidate_set() / camera objects and
    # the debug print are host-side scene bookkeeping with no Pallas equivalent.
    return idx, scores


# ---------------------------------------------------------------------------
if __name__ == "__main__":
    key = jax.random.PRNGKey(0)
    k1, k2, k3, k4, k5 = jax.random.split(key, 5)

    # forward(): identity on an NCHW tensor (pure pass-through).
    x = jax.random.normal(k1, (2, 4, 16, 16), dtype=jnp.float32)
    y = farthest_point_selector_forward(x)
    assert y.shape == x.shape and y.dtype == x.dtype
    assert jnp.allclose(y, x)

    # --- small case (module-sized): 16 candidate cameras, 8 training cameras.
    cand = jax.random.normal(k2, (16, 3), dtype=jnp.float32)
    train = jax.random.normal(k3, (8, 3), dtype=jnp.float32)
    ref = _acq_scores_ref(cand, train)

    # Run the Pallas kernel once even at this size (force past the fast path).
    scores_k = jax.block_until_ready(
        acquisition_scores(cand, train, force_pallas=True))
    assert jnp.allclose(scores_k, ref, rtol=1e-5, atol=1e-5)

    # Auto-dispatched nbvs (uses the XLA fast path at this size).
    sel_idx, scores = nbvs(cand, train, num_views=4)
    scores = jax.block_until_ready(scores)
    sel_idx = jax.block_until_ready(sel_idx)
    assert jnp.allclose(scores, ref, rtol=1e-5, atol=1e-5)
    ref_idx = jnp.argsort(-ref)[:4]
    assert jnp.array_equal(jnp.sort(sel_idx), jnp.sort(ref_idx))

    # --- medium case: exercises multi-tile grid (2 candidate x 2 train tiles)
    # and the k==0 init / resident accumulator path through the Pallas kernel.
    cand_m = jax.random.normal(k4, (200, 3), dtype=jnp.float32)
    train_m = jax.random.normal(k5, (5000, 3), dtype=jnp.float32)
    ref_m = _acq_scores_ref(cand_m, train_m)
    sel_m, scores_m = nbvs(cand_m, train_m, num_views=10)   # auto -> Pallas
    scores_m = jax.block_until_ready(scores_m)
    sel_m = jax.block_until_ready(sel_m)
    assert jnp.allclose(scores_m, ref_m, rtol=1e-4, atol=1e-4)
    ref_m_idx = jnp.argsort(-ref_m)[:10]
    assert jnp.array_equal(jnp.sort(sel_m), jnp.sort(ref_m_idx))

    print("KERNEL_OK")
</pallas_src>

<mosaic_0001>
module attributes {stable_mosaic.version = 11 : i64} {
  func.func @_acq_score_kernel(%arg0: i32, %arg1: i32, %arg2: memref<8x128xf32, #tpu.memory_space<vmem>>, %arg3: memref<8x8xf32, #tpu.memory_space<vmem>>, %arg4: memref<1x128xf32, #tpu.memory_space<vmem>>) attributes {dimension_semantics = [#tpu.dimension_semantics<parallel>, #tpu.dimension_semantics<arbitrary>], iteration_bounds = array<i64: 1, 1>, scalar_prefetch = 0 : i64, scratch_operands = 0 : i64, tpu.core_type = #tpu.core_type<tc>, window_params = [{transform_indices = @transform_0, window_bounds = array<i64: 8, 128>}, {transform_indices = @transform_1, window_bounds = array<i64: 8, 8>}, {transform_indices = @transform_2, window_bounds = array<i64: 1, 128>}]} {
    %c0_i32 = arith.constant 0 : i32
    %0 = arith.cmpi eq, %arg1, %c0_i32 : i32
    %1 = arith.extui %0 : i1 to i32
    %c0_i32_0 = arith.constant 0 : i32
    %2 = arith.cmpi ne, %1, %c0_i32_0 : i32
    scf.if %2 {
      %cst_10 = arith.constant 0.000000e+00 : f32
      %14 = vector.broadcast %cst_10 : f32 to vector<1x128xf32>
      %c0_11 = arith.constant 0 : index
      %c0_12 = arith.constant 0 : index
      %15 = vector.load %arg4[%c0_11, %c0_12] : memref<1x128xf32, #tpu.memory_space<vmem>>, vector<1x128xf32>
      tpu.vector_store %arg4[%c0_11, %c0_12], %14 {strides = array<i32>} : memref<1x128xf32, #tpu.memory_space<vmem>>, vector<1x128xf32>,
    } else {
    }
    %c0 = arith.constant 0 : index
    %c0_1 = arith.constant 0 : index
    %3 = vector.load %arg3[%c0, %c0_1] : memref<8x8xf32, #tpu.memory_space<vmem>>, vector<8x8xf32>
    %c0_2 = arith.constant 0 : index
    %c0_3 = arith.constant 0 : index
    %4 = vector.load %arg2[%c0_2, %c0_3] : memref<8x128xf32, #tpu.memory_space<vmem>>, vector<8x128xf32>
    %cst = arith.constant dense<0.000000e+00> : vector<8x128xf32>
    %5 = tpu.matmul %3, %4, %cst {dimension_numbers = #tpu.dot_dimension_numbers<[1], [0], [0], [1], [0, 0, 1, 1], [], []>, precision = #tpu.contract_precision<fp32>} : vector<8x8xf32>, vector<8x128xf32>, vector<8x128xf32> -> vector<8x128xf32>
    %cst_4 = arith.constant 0.000000e+00 : f32
    %6 = vector.broadcast %cst_4 : f32 to vector<8x128xf32>
    %7 = arith.maximumf %5, %6 : vector<8x128xf32>
    %8 = math.sqrt %7 : vector<8x128xf32>
    %c0_5 = arith.constant 0 : index
    %c0_6 = arith.constant 0 : index
    %9 = vector.load %arg4[%c0_5, %c0_6] : memref<1x128xf32, #tpu.memory_space<vmem>>, vector<1x128xf32>
    %cst_7 = arith.constant dense<0.000000e+00> : vector<128xf32>
    %10 = vector.multi_reduction <add>, %8, %cst_7 [0] : vector<8x128xf32> to vector<128xf32>
    %11 = vector.shape_cast %10 : vector<128xf32> to vector<1x128xf32>
    %12 = arith.addf %9, %11 : vector<1x128xf32>
    %c0_8 = arith.constant 0 : index
    %c0_9 = arith.constant 0 : index
    %13 = vector.load %arg4[%c0_8, %c0_9] : memref<1x128xf32, #tpu.memory_space<vmem>>, vector<1x128xf32>
    tpu.vector_store %arg4[%c0_8, %c0_9], %12 {strides = array<i32>} : memref<1x128xf32, #tpu.memory_space<vmem>>, vector<1x128xf32>,
    return
  }
  func.func @transform_0(%arg0: i32, %arg1: i32) -> (i32, i32) {
    %c0_i32 = arith.constant 0 : i32
    %c0_i32_0 = arith.constant 0 : i32
    return %c0_i32, %arg0 : i32, i32
  }
  func.func @transform_1(%arg0: i32, %arg1: i32) -> (i32, i32) {
    %c0_i32 = arith.constant 0 : i32
    %c0_i32_0 = arith.constant 0 : i32
    return %arg1, %c0_i32 : i32, i32
  }
  func.func @transform_2(%arg0: i32, %arg1: i32) -> (i32, i32) {
    %c0_i32 = arith.constant 0 : i32
    %c0_i32_0 = arith.constant 0 : i32
    return %c0_i32, %arg0 : i32, i32
  }
}

</mosaic_0001>

<llo_original>
// kernel: tpu_custom_call.1
$region0: #{tpu_custom_call.1}
  #allocation0 [shape = 'u32[]', space=smem, size = 0x4, offset = 0x4, fixed_abs, tag = 'smem constant byte address 0x4 - core index']
  #allocation1 [shape = 'u32[144,128]{1,0:T(1,128)}', space=vmem, size = 0x12000, scoped, tag = 'internal scratch']
  %s0 = inlined_call_operand.hbm [shape: f32[8,128], index: 0, kind: input, shape index: {}]
  %s1 = inlined_call_operand.hbm [shape: f32[8,8], index: 1, kind: input, shape index: {}]
  %s2 = inlined_call_operand.hbm [shape: f32[1,128], index: 2, kind: output, shape index: {}]
  %s3 = sld [smem:[#allocation0]]
  $region30: #{tpu_custom_call.1} parent=0
    _
  %s5 = ssub.s32 1, %s3
  %s6 = scalar_select 0, %s5, %s3
  $region1: #{tpu_custom_call.1} parent=0
    #allocation2 [shape = 'u8[4096]{0}', space=vmem, size = 0x1000, scoped, tag = 'input window, operand 0, single buffered']
    #allocation3 [shape = 's32[1]{0}', space=sflag, size = 0x4, scoped, tag = 'scoped memory for tpu_custom_call.1']
    #allocation4 [shape = 's32[1]{0}', space=sflag, size = 0x4, scoped, tag = 'scoped memory for tpu_custom_call.1']
    #allocation5 [shape = 'u8[4096]{0}', space=vmem, size = 0x1000, scoped, tag = 'input window, operand 1, single buffered']
    #allocation6 [shape = 's32[1]{0}', space=sflag, size = 0x4, scoped, tag = 'scoped memory for tpu_custom_call.1']
    #allocation7 [shape = 'u8[512]{0}', space=vmem, size = 0x400, scoped, tag = 'output window, operand 0, single buffered']
    %7 = vsyncpa [#allocation3], 0
    %8 = vsyncpa [#allocation6], 0
    %9 = vsyncpa [#allocation4], 0
    // Predicated region
    $region2: #{tpu_custom_call.1} parent=1 // pred_check
      _
    $region3: #{tpu_custom_call.1} parent=1 // pred_check_branch
      %11 = sbr.rel (0) target = $region5
    $region4: #{tpu_custom_call.1} parent=1 // pred_region
      %s13 = ssub.s32 128, 128
      %14 = vsyncadd [#allocation3], %s13
      %s16 = sshll.u32 [#allocation2], 4
      %s17 = int_to_ptr.vmem [resolvable:$true] %s16
      %19 = dma.hbm_to_vmem [thread:$0]  %s0, 128, %s17, [#allocation3]
    $region5: #{tpu_custom_call.1} parent=1 // pred_fallthru
      _
    // Predicated region
    $region6: #{tpu_custom_call.1} parent=1 // pred_check
      _
    $region7: #{tpu_custom_call.1} parent=1 // pred_check_branch
      %21 = sbr.rel (0) target = $region9
    $region8: #{tpu_custom_call.1} parent=1 // pred_region
      %s23 = ssub.s32 128, 128
      %24 = vsyncadd [#allocation6], %s23
      %s26 = sshll.u32 [#allocation5], 4
      %s27 = int_to_ptr.vmem [resolvable:$true] %s26
      %29 = dma.hbm_to_vmem [thread:$0]  %s1, 128, %s27, [#allocation6]
    $region9: #{tpu_custom_call.1} parent=1 // pred_fallthru
      _
    // Predicated region
    $region10: #{tpu_custom_call.1} parent=1 // pred_check
      _
    $region11: #{tpu_custom_call.1} parent=1 // pred_check_branch
      %31 = sbr.rel (0) target = $region13
    $region12: #{tpu_custom_call.1} parent=1 // pred_region
      %32 = dma.done [#allocation3], 128
    $region13: #{tpu_custom_call.1} parent=1 // pred_fallthru
      _
    // Predicated region
    $region14: #{tpu_custom_call.1} parent=1 // pred_check
      _
    $region15: #{tpu_custom_call.1} parent=1 // pred_check_branch
      %34 = sbr.rel (0) target = $region17
    $region16: #{tpu_custom_call.1} parent=1 // pred_region
      %35 = dma.done [#allocation6], 128
    $region17: #{tpu_custom_call.1} parent=1 // pred_fallthru
      _
    %p36 = scmp.eq.s32.totalorder 0, 0
    // Predicated region
    $region18: #{tpu_custom_call.1} parent=1 // pred_check
      %p37 = pneg %p36
    $region19: #{tpu_custom_call.1} parent=1 // pred_check_branch
      %39 = sbr.rel (%p37) target = $region21
    $region20: #{tpu_custom_call.1} parent=1 // pred_region
      %40 = vst [vmem:[#allocation7] sm:$0x1] 0.0
    $region21: #{tpu_custom_call.1} parent=1 // pred_fallthru
      _
    %v41 = vld [vmem:[#allocation5] sm:$0xff]
    %v42 = vld [vmem:[#allocation2] sm:$0xff]
    %vm43 = vcmask 64512
    %v45 = vsel %vm43, %v41, 0
    %47 = vmatprep.subr.mxu0 0.0
    %v48 = vand.u32 %v42, 4294901760
    %49 = vmatpush1.msra.mxu0 %v48
    %50 = vmatprep.subr.mxu0 0.0
    %51 = vmatpush1.msra.mxu0 0.0
    %52 = vmatprep.subr.mxu0 0.0
    %53 = vmatpush1.msra.mxu0 0.0
    %54 = vmatprep.subr.mxu0 0.0
    %55 = vmatpush1.msra.mxu0 0.0
    %56 = vmatprep.subr.mxu0 0.0
    %57 = vmatpush1.msra.mxu0 0.0
    %58 = vmatprep.subr.mxu0 0.0
    %59 = vmatpush1.msra.mxu0 0.0
    %60 = vmatprep.subr.mxu0 0.0
    %61 = vmatpush1.msra.mxu0 0.0
    %62 = vmatprep.subr.mxu0 0.0
    %63 = vmatpush1.msra.mxu0 0.0
    %64 = vmatprep.subr.mxu0 0.0
    %65 = vmatpush1.msra.mxu0 0.0
    %66 = vmatprep.subr.mxu0 0.0
    %67 = vmatpush1.msra.mxu0 0.0
    %68 = vmatprep.subr.mxu0 0.0
    %69 = vmatpush1.msra.mxu0 0.0
    %70 = vmatprep.subr.mxu0 0.0
    %71 = vmatpush1.msra.mxu0 0.0
    %72 = vmatprep.subr.mxu0 0.0
    %73 = vmatpush1.msra.mxu0 0.0
    %74 = vmatprep.subr.mxu0 0.0
    %75 = vmatpush1.msra.mxu0 0.0
    %76 = vmatprep.subr.mxu0 0.0
    %77 = vmatpush1.msra.mxu0 0.0
    %78 = vmatprep.subr.mxu0 0.0
    %79 = vmatpush1.msra.mxu0 0.0
    %80 = vmatprep.subr.mxu0 0.0
    %81 = vmatpush1.msra.mxu0 0.0
    %82 = vmatprep.subr.mxu0 0.0
    %83 = vmatpush1.msra.mxu0 0.0
    %84 = vmatprep.subr.mxu0 0.0
    %85 = vmatpush1.msra.mxu0 0.0
    %86 = vmatprep.subr.mxu0 0.0
    %87 = vmatpush1.msra.mxu0 0.0
    %88 = vmatprep.subr.mxu0 0.0
    %89 = vmatpush1.msra.mxu0 0.0
    %90 = vmatprep.subr.mxu0 0.0
    %91 = vmatpush1.msra.mxu0 0.0
    %92 = vmatprep.subr.mxu0 0.0
    %93 = vmatpush1.msra.mxu0 0.0
    %94 = vmatprep.subr.mxu0 0.0
    %95 = vmatpush1.msra.mxu0 0.0
    %96 = vmatprep.subr.mxu0 0.0
    %97 = vmatpush1.msra.mxu0 0.0
    %98 = vmatprep.subr.mxu0 0.0
    %99 = vmatpush1.msra.mxu0 0.0
    %100 = vmatprep.subr.mxu0 0.0
    %101 = vmatpush1.msra.mxu0 0.0
    %102 = vmatprep.subr.mxu0 0.0
    %103 = vmatpush1.msra.mxu0 0.0
    %104 = vmatprep.subr.mxu0 0.0
    %105 = vmatpush1.msra.mxu0 0.0
    %106 = vmatprep.subr.mxu0 0.0
    %107 = vmatpush1.msra.mxu0 0.0
    %108 = vmatprep.subr.mxu0 0.0
    %109 = vmatpush1.msra.mxu0 0.0
    %110 = vmatprep.subr.mxu0 0.0
    %111 = vmatpush1.msra.mxu0 0.0
    %112 = vmatprep.mubr.f32.mxu0 0.0
    %v113 = vand.u32 %v45, 4294901760
    %v114 = vsub.f32 %v45, %v113
    %v115 = vand.u32 %v114, 4294901760
    %v116 = vsub.f32 %v114, %v115
    %v117 = vand.u32 %v116, 4294901760
    %118 = vmatmul.mubr.f32.gmra.mrb[0].mxu0 %v117
    %v119 = vpop.f32.mrb[0].mxu0
    %v120 = vadd.f32 0.0, %v119
    %v121 = vpop.f32.mrb[0].mxu0
    %122 = vdwg.mxu0
    %123 = vmatprep.subr.mxu0 0.0
    %v124 = vand.u32 %v42, 4294901760
    %v125 = vsub.f32 %v42, %v124
    %v126 = vand.u32 %v125, 4294901760
    %v127 = vsub.f32 %v125, %v126
    %v128 = vand.u32 %v127, 4294901760
    %129 = vmatpush1.msra.mxu0 %v128
    %130 = vmatprep.subr.mxu0 0.0
    %131 = vmatpush1.msra.mxu0 0.0
    %132 = vmatprep.subr.mxu0 0.0
    %133 = vmatpush1.msra.mxu0 0.0
    %134 = vmatprep.subr.mxu0 0.0
    %135 = vmatpush1.msra.mxu0 0.0
    %136 = vmatprep.subr.mxu0 0.0
    %137 = vmatpush1.msra.mxu0 0.0
    %138 = vmatprep.subr.mxu0 0.0
    %139 = vmatpush1.msra.mxu0 0.0
    %140 = vmatprep.subr.mxu0 0.0
    %141 = vmatpush1.msra.mxu0 0.0
    %142 = vmatprep.subr.mxu0 0.0
    %143 = vmatpush1.msra.mxu0 0.0
    %144 = vmatprep.subr.mxu0 0.0
    %145 = vmatpush1.msra.mxu0 0.0
    %146 = vmatprep.subr.mxu0 0.0
    %147 = vmatpush1.msra.mxu0 0.0
    %148 = vmatprep.subr.mxu0 0.0
    %149 = vmatpush1.msra.mxu0 0.0
    %150 = vmatprep.subr.mxu0 0.0
    %151 = vmatpush1.msra.mxu0 0.0
    %152 = vmatprep.subr.mxu0 0.0
    %153 = vmatpush1.msra.mxu0 0.0
    %154 = vmatprep.subr.mxu0 0.0
    %155 = vmatpush1.msra.mxu0 0.0
    %156 = vmatprep.subr.mxu0 0.0
    %157 = vmatpush1.msra.mxu0 0.0
    %158 = vmatprep.subr.mxu0 0.0
    %159 = vmatpush1.msra.mxu0 0.0
    %160 = vmatprep.subr.mxu0 0.0
    %161 = vmatpush1.msra.mxu0 0.0
    %162 = vmatprep.subr.mxu0 0.0
    %163 = vmatpush1.msra.mxu0 0.0
    %164 = vmatprep.subr.mxu0 0.0
    %165 = vmatpush1.msra.mxu0 0.0
    %166 = vmatprep.subr.mxu0 0.0
    %167 = vmatpush1.msra.mxu0 0.0
    %168 = vmatprep.subr.mxu0 0.0
    %169 = vmatpush1.msra.mxu0 0.0
    %170 = vmatprep.subr.mxu0 0.0
    %171 = vmatpush1.msra.mxu0 0.0
    %172 = vmatprep.subr.mxu0 0.0
    %173 = vmatpush1.msra.mxu0 0.0
    %174 = vmatprep.subr.mxu0 0.0
    %175 = vmatpush1.msra.mxu0 0.0
    %176 = vmatprep.subr.mxu0 0.0
    %177 = vmatpush1.msra.mxu0 0.0
    %178 = vmatprep.subr.mxu0 0.0
    %179 = vmatpush1.msra.mxu0 0.0
    %180 = vmatprep.subr.mxu0 0.0
    %181 = vmatpush1.msra.mxu0 0.0
    %182 = vmatprep.subr.mxu0 0.0
    %183 = vmatpush1.msra.mxu0 0.0
    %184 = vmatprep.subr.mxu0 0.0
    %185 = vmatpush1.msra.mxu0 0.0
    %186 = vmatprep.subr.mxu0 0.0
    %187 = vmatpush1.msra.mxu0 0.0
    %188 = vmatprep.subr.mxu0 0.0
    %189 = vmatpush1.msra.mxu0 0.0
    %190 = vmatprep.subr.mxu0 0.0
    %191 = vmatpush1.msra.mxu0 0.0
    %192 = vmatprep.mubr.f32.mxu0 0.0
    %v193 = vand.u32 %v45, 4294901760
    %194 = vmatmul.mubr.f32.gmra.mrb[0].mxu0 %v193
    %v195 = vpop.f32.mrb[0].mxu0
    %v196 = vadd.f32 %v120, %v195
    %v197 = vpop.f32.mrb[0].mxu0
    %198 = vdwg.mxu0
    %199 = vmatprep.subr.mxu0 0.0
    %v200 = vand.u32 %v42, 4294901760
    %v201 = vsub.f32 %v42, %v200
    %202 = vmatpush1.msra.mxu0 %v201
    %203 = vmatprep.subr.mxu0 0.0
    %204 = vmatpush1.msra.mxu0 0.0
    %205 = vmatprep.subr.mxu0 0.0
    %206 = vmatpush1.msra.mxu0 0.0
    %207 = vmatprep.subr.mxu0 0.0
    %208 = vmatpush1.msra.mxu0 0.0
    %209 = vmatprep.subr.mxu0 0.0
    %210 = vmatpush1.msra.mxu0 0.0
    %211 = vmatprep.subr.mxu0 0.0
    %212 = vmatpush1.msra.mxu0 0.0
    %213 = vmatprep.subr.mxu0 0.0
    %214 = vmatpush1.msra.mxu0 0.0
    %215 = vmatprep.subr.mxu0 0.0
    %216 = vmatpush1.msra.mxu0 0.0
    %217 = vmatprep.subr.mxu0 0.0
    %218 = vmatpush1.msra.mxu0 0.0
    %219 = vmatprep.subr.mxu0 0.0
    %220 = vmatpush1.msra.mxu0 0.0
    %221 = vmatprep.subr.mxu0 0.0
    %222 = vmatpush1.msra.mxu0 0.0
    %223 = vmatprep.subr.mxu0 0.0
    %224 = vmatpush1.msra.mxu0 0.0
    %225 = vmatprep.subr.mxu0 0.0
    %226 = vmatpush1.msra.mxu0 0.0
    %227 = vmatprep.subr.mxu0 0.0
    %228 = vmatpush1.msra.mxu0 0.0
    %229 = vmatprep.subr.mxu0 0.0
    %230 = vmatpush1.msra.mxu0 0.0
    %231 = vmatprep.subr.mxu0 0.0
    %232 = vmatpush1.msra.mxu0 0.0
    %233 = vmatprep.subr.mxu0 0.0
    %234 = vmatpush1.msra.mxu0 0.0
    %235 = vmatprep.subr.mxu0 0.0
    %236 = vmatpush1.msra.mxu0 0.0
    %237 = vmatprep.subr.mxu0 0.0
    %238 = vmatpush1.msra.mxu0 0.0
    %239 = vmatprep.subr.mxu0 0.0
    %240 = vmatpush1.msra.mxu0 0.0
    %241 = vmatprep.subr.mxu0 0.0
    %242 = vmatpush1.msra.mxu0 0.0
    %243 = vmatprep.subr.mxu0 0.0
    %244 = vmatpush1.msra.mxu0 0.0
    %245 = vmatprep.subr.mxu0 0.0
    %246 = vmatpush1.msra.mxu0 0.0
    %247 = vmatprep.subr.mxu0 0.0
    %248 = vmatpush1.msra.mxu0 0.0
    %249 = vmatprep.subr.mxu0 0.0
    %250 = vmatpush1.msra.mxu0 0.0
    %251 = vmatprep.subr.mxu0 0.0
    %252 = vmatpush1.msra.mxu0 0.0
    %253 = vmatprep.subr.mxu0 0.0
    %254 = vmatpush1.msra.mxu0 0.0
    %255 = vmatprep.subr.mxu0 0.0
    %256 = vmatpush1.msra.mxu0 0.0
    %257 = vmatprep.subr.mxu0 0.0
    %258 = vmatpush1.msra.mxu0 0.0
    %259 = vmatprep.subr.mxu0 0.0
    %260 = vmatpush1.msra.mxu0 0.0
    %261 = vmatprep.subr.mxu0 0.0
    %262 = vmatpush1.msra.mxu0 0.0
    %263 = vmatprep.subr.mxu0 0.0
    %264 = vmatpush1.msra.mxu0 0.0
    %265 = vmatprep.mubr.f32.mxu0 0.0
    %v266 = vand.u32 %v45, 4294901760
    %v267 = vsub.f32 %v45, %v266
    %268 = vmatmul.mubr.f32.gmra.mrb[0].mxu0 %v267
    %v269 = vpop.f32.mrb[0].mxu0
    %v270 = vadd.f32 %v196, %v269
    %v271 = vpop.f32.mrb[0].mxu0
    %272 = vdwg.mxu0
    %273 = vmatprep.subr.mxu0 0.0
    %v274 = vand.u32 %v42, 4294901760
    %275 = vmatpush1.msra.mxu0 %v274
    %276 = vmatprep.subr.mxu0 0.0
    %277 = vmatpush1.msra.mxu0 0.0
    %278 = vmatprep.subr.mxu0 0.0
    %279 = vmatpush1.msra.mxu0 0.0
    %280 = vmatprep.subr.mxu0 0.0
    %281 = vmatpush1.msra.mxu0 0.0
    %282 = vmatprep.subr.mxu0 0.0
    %283 = vmatpush1.msra.mxu0 0.0
    %284 = vmatprep.subr.mxu0 0.0
    %285 = vmatpush1.msra.mxu0 0.0
    %286 = vmatprep.subr.mxu0 0.0
    %287 = vmatpush1.msra.mxu0 0.0
    %288 = vmatprep.subr.mxu0 0.0
    %289 = vmatpush1.msra.mxu0 0.0
    %290 = vmatprep.subr.mxu0 0.0
    %291 = vmatpush1.msra.mxu0 0.0
    %292 = vmatprep.subr.mxu0 0.0
    %293 = vmatpush1.msra.mxu0 0.0
    %294 = vmatprep.subr.mxu0 0.0
    %295 = vmatpush1.msra.mxu0 0.0
    %296 = vmatprep.subr.mxu0 0.0
    %297 = vmatpush1.msra.mxu0 0.0
    %298 = vmatprep.subr.mxu0 0.0
    %299 = vmatpush1.msra.mxu0 0.0
    %300 = vmatprep.subr.mxu0 0.0
    %301 = vmatpush1.msra.mxu0 0.0
    %302 = vmatprep.subr.mxu0 0.0
    %303 = vmatpush1.msra.mxu0 0.0
    %304 = vmatprep.subr.mxu0 0.0
    %305 = vmatpush1.msra.mxu0 0.0
    %306 = vmatprep.subr.mxu0 0.0
    %307 = vmatpush1.msra.mxu0 0.0
    %308 = vmatprep.subr.mxu0 0.0
    %309 = vmatpush1.msra.mxu0 0.0
    %310 = vmatprep.subr.mxu0 0.0
    %311 = vmatpush1.msra.mxu0 0.0
    %312 = vmatprep.subr.mxu0 0.0
    %313 = vmatpush1.msra.mxu0 0.0
    %314 = vmatprep.subr.mxu0 0.0
    %315 = vmatpush1.msra.mxu0 0.0
    %316 = vmatprep.subr.mxu0 0.0
    %317 = vmatpush1.msra.mxu0 0.0
    %318 = vmatprep.subr.mxu0 0.0
    %319 = vmatpush1.msra.mxu0 0.0
    %320 = vmatprep.subr.mxu0 0.0
    %321 = vmatpush1.msra.mxu0 0.0
    %322 = vmatprep.subr.mxu0 0.0
    %323 = vmatpush1.msra.mxu0 0.0
    %324 = vmatprep.subr.mxu0 0.0
    %325 = vmatpush1.msra.mxu0 0.0
    %326 = vmatprep.subr.mxu0 0.0
    %327 = vmatpush1.msra.mxu0 0.0
    %328 = vmatprep.subr.mxu0 0.0
    %329 = vmatpush1.msra.mxu0 0.0
    %330 = vmatprep.subr.mxu0 0.0
    %331 = vmatpush1.msra.mxu0 0.0
    %332 = vmatprep.subr.mxu0 0.0
    %333 = vmatpush1.msra.mxu0 0.0
    %334 = vmatprep.subr.mxu0 0.0
    %335 = vmatpush1.msra.mxu0 0.0
    %336 = vmatprep.subr.mxu0 0.0
    %337 = vmatpush1.msra.mxu0 0.0
    %338 = vmatprep.mubr.f32.mxu0 0.0
    %v339 = vand.u32 %v45, 4294901760
    %v340 = vsub.f32 %v45, %v339
    %v341 = vand.u32 %v340, 4294901760
    %342 = vmatmul.mubr.f32.gmra.mrb[0].mxu0 %v341
    %v343 = vpop.f32.mrb[0].mxu0
    %v344 = vadd.f32 %v270, %v343
    %v345 = vpop.f32.mrb[0].mxu0
    %346 = vdwg.mxu0
    %347 = vmatprep.subr.mxu0 0.0
    %v348 = vand.u32 %v42, 4294901760
    %v349 = vsub.f32 %v42, %v348
    %v350 = vand.u32 %v349, 4294901760
    %351 = vmatpush1.msra.mxu0 %v350
    %352 = vmatprep.subr.mxu0 0.0
    %353 = vmatpush1.msra.mxu0 0.0
    %354 = vmatprep.subr.mxu0 0.0
    %355 = vmatpush1.msra.mxu0 0.0
    %356 = vmatprep.subr.mxu0 0.0
    %357 = vmatpush1.msra.mxu0 0.0
    %358 = vmatprep.subr.mxu0 0.0
    %359 = vmatpush1.msra.mxu0 0.0
    %360 = vmatprep.subr.mxu0 0.0
    %361 = vmatpush1.msra.mxu0 0.0
    %362 = vmatprep.subr.mxu0 0.0
    %363 = vmatpush1.msra.mxu0 0.0
    %364 = vmatprep.subr.mxu0 0.0
    %365 = vmatpush1.msra.mxu0 0.0
    %366 = vmatprep.subr.mxu0 0.0
    %367 = vmatpush1.msra.mxu0 0.0
    %368 = vmatprep.subr.mxu0 0.0
    %369 = vmatpush1.msra.mxu0 0.0
    %370 = vmatprep.subr.mxu0 0.0
    %371 = vmatpush1.msra.mxu0 0.0
    %372 = vmatprep.subr.mxu0 0.0
    %373 = vmatpush1.msra.mxu0 0.0
    %374 = vmatprep.subr.mxu0 0.0
    %375 = vmatpush1.msra.mxu0 0.0
    %376 = vmatprep.subr.mxu0 0.0
    %377 = vmatpush1.msra.mxu0 0.0
    %378 = vmatprep.subr.mxu0 0.0
    %379 = vmatpush1.msra.mxu0 0.0
    %380 = vmatprep.subr.mxu0 0.0
    %381 = vmatpush1.msra.mxu0 0.0
    %382 = vmatprep.subr.mxu0 0.0
    %383 = vmatpush1.msra.mxu0 0.0
    %384 = vmatprep.subr.mxu0 0.0
    %385 = vmatpush1.msra.mxu0 0.0
    %386 = vmatprep.subr.mxu0 0.0
    %387 = vmatpush1.msra.mxu0 0.0
    %388 = vmatprep.subr.mxu0 0.0
    %389 = vmatpush1.msra.mxu0 0.0
    %390 = vmatprep.subr.mxu0 0.0
    %391 = vmatpush1.msra.mxu0 0.0
    %392 = vmatprep.subr.mxu0 0.0
    %393 = vmatpush1.msra.mxu0 0.0
    %394 = vmatprep.subr.mxu0 0.0
    %395 = vmatpush1.msra.mxu0 0.0
    %396 = vmatprep.subr.mxu0 0.0
    %397 = vmatpush1.msra.mxu0 0.0
    %398 = vmatprep.subr.mxu0 0.0
    %399 = vmatpush1.msra.mxu0 0.0
    %400 = vmatprep.subr.mxu0 0.0
    %401 = vmatpush1.msra.mxu0 0.0
    %402 = vmatprep.subr.mxu0 0.0
    %403 = vmatpush1.msra.mxu0 0.0
    %404 = vmatprep.subr.mxu0 0.0
    %405 = vmatpush1.msra.mxu0 0.0
    %406 = vmatprep.subr.mxu0 0.0
    %407 = vmatpush1.msra.mxu0 0.0
    %408 = vmatprep.subr.mxu0 0.0
    %409 = vmatpush1.msra.mxu0 0.0
    %410 = vmatprep.subr.mxu0 0.0
    %411 = vmatpush1.msra.mxu0 0.0
    %412 = vmatprep.subr.mxu0 0.0
    %413 = vmatpush1.msra.mxu0 0.0
    %414 = vmatprep.mubr.f32.mxu0 0.0
    %v415 = vand.u32 %v45, 4294901760
    %416 = vmatmul.mubr.f32.gmra.mrb[0].mxu0 %v415
    %v417 = vpop.f32.mrb[0].mxu0
    %v418 = vadd.f32 %v344, %v417
    %v419 = vpop.f32.mrb[0].mxu0
    %420 = vdwg.mxu0
    %421 = vmatprep.subr.mxu0 0.0
    %v422 = vand.u32 %v42, 4294901760
    %423 = vmatpush1.msra.mxu0 %v422
    %424 = vmatprep.subr.mxu0 0.0
    %425 = vmatpush1.msra.mxu0 0.0
    %426 = vmatprep.subr.mxu0 0.0
    %427 = vmatpush1.msra.mxu0 0.0
    %428 = vmatprep.subr.mxu0 0.0
    %429 = vmatpush1.msra.mxu0 0.0
    %430 = vmatprep.subr.mxu0 0.0
    %431 = vmatpush1.msra.mxu0 0.0
    %432 = vmatprep.subr.mxu0 0.0
    %433 = vmatpush1.msra.mxu0 0.0
    %434 = vmatprep.subr.mxu0 0.0
    %435 = vmatpush1.msra.mxu0 0.0
    %436 = vmatprep.subr.mxu0 0.0
    %437 = vmatpush1.msra.mxu0 0.0
    %438 = vmatprep.subr.mxu0 0.0
    %439 = vmatpush1.msra.mxu0 0.0
    %440 = vmatprep.subr.mxu0 0.0
    %441 = vmatpush1.msra.mxu0 0.0
    %442 = vmatprep.subr.mxu0 0.0
    %443 = vmatpush1.msra.mxu0 0.0
    %444 = vmatprep.subr.mxu0 0.0
    %445 = vmatpush1.msra.mxu0 0.0
    %446 = vmatprep.subr.mxu0 0.0
    %447 = vmatpush1.msra.mxu0 0.0
    %448 = vmatprep.subr.mxu0 0.0
    %449 = vmatpush1.msra.mxu0 0.0
    %450 = vmatprep.subr.mxu0 0.0
    %451 = vmatpush1.msra.mxu0 0.0
    %452 = vmatprep.subr.mxu0 0.0
    %453 = vmatpush1.msra.mxu0 0.0
    %454 = vmatprep.subr.mxu0 0.0
    %455 = vmatpush1.msra.mxu0 0.0
    %456 = vmatprep.subr.mxu0 0.0
    %457 = vmatpush1.msra.mxu0 0.0
    %458 = vmatprep.subr.mxu0 0.0
    %459 = vmatpush1.msra.mxu0 0.0
    %460 = vmatprep.subr.mxu0 0.0
    %461 = vmatpush1.msra.mxu0 0.0
    %462 = vmatprep.subr.mxu0 0.0
    %463 = vmatpush1.msra.mxu0 0.0
    %464 = vmatprep.subr.mxu0 0.0
    %465 = vmatpush1.msra.mxu0 0.0
    %466 = vmatprep.subr.mxu0 0.0
    %467 = vmatpush1.msra.mxu0 0.0
    %468 = vmatprep.subr.mxu0 0.0
    %469 = vmatpush1.msra.mxu0 0.0
    %470 = vmatprep.subr.mxu0 0.0
    %471 = vmatpush1.msra.mxu0 0.0
    %472 = vmatprep.subr.mxu0 0.0
    %473 = vmatpush1.msra.mxu0 0.0
    %474 = vmatprep.subr.mxu0 0.0
    %475 = vmatpush1.msra.mxu0 0.0
    %476 = vmatprep.subr.mxu0 0.0
    %477 = vmatpush1.msra.mxu0 0.0
    %478 = vmatprep.subr.mxu0 0.0
    %479 = vmatpush1.msra.mxu0 0.0
    %480 = vmatprep.subr.mxu0 0.0
    %481 = vmatpush1.msra.mxu0 0.0
    %482 = vmatprep.subr.mxu0 0.0
    %483 = vmatpush1.msra.mxu0 0.0
    %484 = vmatprep.subr.mxu0 0.0
    %485 = vmatpush1.msra.mxu0 0.0
    %486 = vmatprep.mubr.f32.mxu0 0.0
    %v487 = vand.u32 %v45, 4294901760
    %488 = vmatmul.mubr.f32.gmra.mrb[0].mxu0 %v487
    %v489 = vpop.f32.mrb[0].mxu0
    %v490 = vadd.f32 %v418, %v489
    %v491 = vpop.f32.mrb[0].mxu0
    %492 = vdwg.mxu0
    %v493 = vmax.f32 %v490, 0.0
    %v494 = vrsqrt.pop %v493
    %v495 = vmul.f32 %v493, %v494
    %vm496 = vcmp.eq.f32.partialorder %v493, inf
    %v497 = vsel %vm496, %v493, %v495
    %vm498 = vcmp.eq.f32.partialorder %v493, 0.0
    %v499 = vand.u32 %v493, 2147483648
    %v500 = vsel %vm498, %v499, %v497
    %v501 = vld [vmem:[#allocation7] sm:$0x1]
    %v502 = vrot.slane %v500, 4
    %v503 = vadd.f32 %v500, %v502
    %v504 = vrot.slane %v503, 2
    %v505 = vadd.f32 %v503, %v504
    %v506 = vrot.slane %v505, 1
    %v507 = vadd.f32 %v505, %v506
    %v508 = vadd.f32 %v501, %v507
    %509 = vst [vmem:[#allocation7] sm:$0x1] %v508
    // Predicated region
    $region22: #{tpu_custom_call.1} parent=1 // pred_check
      _
    $region23: #{tpu_custom_call.1} parent=1 // pred_check_branch
      %511 = sbr.rel (0) target = $region25
    $region24: #{tpu_custom_call.1} parent=1 // pred_region
      %s513 = ssub.s32 16, 16
      %514 = vsyncadd [#allocation4], %s513
      %s516 = sshll.u32 [#allocation7], 4
      %s517 = int_to_ptr.vmem [resolvable:$true] %s516
      %519 = dma.vmem_to_hbm [thread:$0]  %s517, 16, %s2, [#allocation4]
    $region25: #{tpu_custom_call.1} parent=1 // pred_fallthru
      _
    // Predicated region
    $region26: #{tpu_custom_call.1} parent=1 // pred_check
      _
    $region27: #{tpu_custom_call.1} parent=1 // pred_check_branch
      %521 = sbr.rel (0) target = $region29
    $region28: #{tpu_custom_call.1} parent=1 // pred_region
      %522 = dma.done [#allocation4], 16
    $region29: #{tpu_custom_call.1} parent=1 // pred_fallthru
      _
    %523 = vsyncpa [#allocation3], 1
    %524 = vsyncpa [#allocation6], 1
    %525 = vsyncpa [#allocation4], 1

</llo_original>
